<compile_context>
chip_gen: v7x
topology: tpu7x:2x2x1
jax: 0.10.0
libtpu: 0.0.40
codegen_flags: <defaults>
</compile_context>

<pallas_src>
import functools

import jax
import jax.numpy as jnp
from jax.experimental import pallas as pl
from jax.experimental.pallas import tpu as pltpu


def _make_secat_kernel(inv_hw):
    def kernel(x_ref, cat_ref, w1x_ref, w1c_ref, w2_ref, o_ref):
        # x_ref:   (Bt, C, HWp)  C on sublanes, HWp lane-dense (multiple of 128)
        # cat_ref: (Bt, CAT_C)   f32
        # w1x_ref: (HID, C)      first Linear, original (out, in) layout, x columns
        # w1c_ref: (HID, CAT_C)  first Linear, original (out, in) layout, cat columns
        # w2_ref:  (C, HID)      second Linear, original (out, in) layout
        bt = x_ref.shape[0]

        # AdaptiveAvgPool2d(1): one batched lane-reduction over the whole block.
        # sum * (1/true_HW) so zero lane-padding never biases the mean.
        y = jnp.sum(x_ref[...], axis=-1, dtype=jnp.float32) * inv_hw     # (Bt, C)

        # FC1 on concat([y, cat]):  W1[:, :C] . y  +  W1[:, C:] . cat,
        # contracting the input-feature axes directly (no materialized transposes).
        z = jax.lax.dot_general(
            w1x_ref[...], y, (((1,), (1,)), ((), ())),
            preferred_element_type=jnp.float32)                          # (HID, Bt)
        z = z + jax.lax.dot_general(
            w1c_ref[...], cat_ref[...], (((1,), (1,)), ((), ())),
            preferred_element_type=jnp.float32)                          # (HID, Bt)
        h = jnp.maximum(z, 0.0)                                          # ReLU

        # FC2 + sigmoid in column form: (C, HID) @ (HID, Bt) -> (C, Bt),
        # so the gate keeps C on sublanes.
        s = jax.nn.sigmoid(
            jax.lax.dot_general(w2_ref[...], h, (((1,), (0,)), ((), ())),
                                preferred_element_type=jnp.float32))     # (C, Bt)

        # Gate: x * y.expand_as(x).  Per-batch (C, 1) column broadcast along the
        # lane (HW) axis; static slices (Bt is kept small by the wrapper) and
        # re-reading x_ref[i] per batch keep vreg live ranges bounded.
        for i in range(bt):
            o_ref[i] = (x_ref[i] * s[:, i:i + 1]).astype(o_ref.dtype)

    return kernel


def secat_layer(x, cat_feature, w1, w2, *, batch_blocks=None):
    """SeCatLayer forward.

    x: (B, C, H, W)                    -- any float dtype (bf16 keeps HBM traffic low)
    cat_feature: (B, CAT_C)
    w1: (HID, C + CAT_C)               -- PyTorch Linear weight layout, no bias
    w2: (C, HID)                       -- PyTorch Linear weight layout, no bias
    batch_blocks: number of grid steps over the batch (must divide B).  Default
    is auto: 1 for tiny inputs, otherwise >=4 steps with ~1 MiB x blocks (even
    step count so v7x's two TensorCores both get work), capped for VMEM.
    """
    b, c, hh, ww = x.shape
    cat_c = cat_feature.shape[1]
    hid, in_f = w1.shape
    assert in_f == c + cat_c, "w1 must have shape (hidden, channel + cat_channel)"
    assert w2.shape == (c, hid)
    hw = hh * ww

    # Gate math stays f32 regardless of x's dtype (weights/cat are tiny).
    w1 = jnp.asarray(w1, jnp.float32)
    w2 = jnp.asarray(w2, jnp.float32)
    cat_feature = jnp.asarray(cat_feature, jnp.float32)

    # Lane-dense-store guard: pad HW up to a multiple of 128 so output stores
    # stay unmasked vst (masked partial stores are several x slower).
    hw_pad = pl.cdiv(hw, 128) * 128
    x_flat = x.reshape(b, c, hw)
    if hw_pad != hw:
        x_flat = jnp.pad(x_flat, ((0, 0), (0, 0), (0, hw_pad - hw)))

    if batch_blocks is None:
        x_bytes = b * c * hw_pad * x.dtype.itemsize
        if x_bytes <= (1 << 20):
            # Tiny problem: per-step pipeline overhead dominates -> collapse grid.
            batch_blocks = 1
        else:
            one_mib = 1 << 20
            # Input and output x blocks are each double-buffered; keep the
            # steady-state footprint conservative so the default scoped-VMEM
            # limit holds on every generation (v5e 16 MiB / v6e 32 MiB / v7x
            # 32 MiB scoped of 64 MiB physical).
            vmem_budget = 12 << 20
            desired = max(
                4,                                    # >=4 steps -> real pipelining
                pl.cdiv(x_bytes, one_mib),            # ~<=1 MiB x block per step
                pl.cdiv(4 * x_bytes, vmem_budget),    # double-buffered in+out fits VMEM
                pl.cdiv(b, 8),                        # keep the static gate loop short
            )
            desired = min(desired, b)
            # Smallest divisor of b reaching `desired` (block stays <= target).
            batch_blocks = next(d for d in range(desired, b + 1) if b % d == 0)
            # Prefer an even step count so v7x's two TensorCores both get work
            # on the "parallel" batch axis.
            if batch_blocks % 2 and batch_blocks < b and b % (2 * batch_blocks) == 0:
                batch_blocks *= 2

    assert b % batch_blocks == 0, "batch must divide evenly into batch_blocks"
    bt = b // batch_blocks

    # Split FC1's columns (input features) into x / cat parts so the kernel
    # never concatenates.  Assumes concat order [pooled_y, cat_feature].
    w1x = w1[:, :c]          # (HID, C)
    w1c = w1[:, c:]          # (HID, CAT_C)

    kernel = _make_secat_kernel(1.0 / float(hw))

    out_flat = pl.pallas_call(
        kernel,
        out_shape=jax.ShapeDtypeStruct((b, c, hw_pad), x.dtype),
        grid_spec=pltpu.PrefetchScalarGridSpec(
            num_scalar_prefetch=0,
            grid=(batch_blocks,),
            in_specs=[
                pl.BlockSpec((bt, c, hw_pad), lambda i: (i, 0, 0)),
                pl.BlockSpec((bt, cat_c), lambda i: (i, 0)),
                # Weights: constant index_map -> VMEM-resident across steps.
                pl.BlockSpec((hid, c), lambda i: (0, 0)),
                pl.BlockSpec((hid, cat_c), lambda i: (0, 0)),
                pl.BlockSpec((c, hid), lambda i: (0, 0)),
            ],
            out_specs=pl.BlockSpec((bt, c, hw_pad), lambda i: (i, 0, 0)),
        ),
        compiler_params=pltpu.CompilerParams(
            dimension_semantics=("parallel",)),
    )(x_flat, cat_feature, w1x, w1c, w2)

    if hw_pad != hw:
        out_flat = out_flat[..., :hw]
    return out_flat.reshape(b, c, hh, ww)


def secat_reference(x, cat_feature, w1, w2):
    """Pure-JAX reference mirroring the PyTorch forward."""
    x = x.astype(jnp.float32)
    y = jnp.mean(x, axis=(2, 3))                         # avg_pool -> (B, C)
    y = jnp.concatenate([y, cat_feature.astype(jnp.float32)], axis=1)
    y = jnp.maximum(y @ w1.T, 0.0)                       # Linear + ReLU
    y = jax.nn.sigmoid(y @ w2.T)                         # Linear + Sigmoid
    return x * y[:, :, None, None]


if __name__ == "__main__":
    # Module config: channel=64, cat_channel=16, reduction=16 -> hidden=4
    B, C, CAT_C, H, W = 2, 64, 16, 16, 16
    REDUCTION = 16
    HID = C // REDUCTION

    key = jax.random.PRNGKey(0)
    kx, kc, k1, k2, kx2 = jax.random.split(key, 5)

    x = jax.random.normal(kx, (B, C, H, W), dtype=jnp.float32)
    cat_feature = jax.random.normal(kc, (B, CAT_C), dtype=jnp.float32)
    # Deterministic synthetic parameters (PyTorch Linear weight layout: (out, in)).
    w1 = 0.1 * jax.random.normal(k1, (HID, C + CAT_C), dtype=jnp.float32)
    w2 = 0.1 * jax.random.normal(k2, (C, HID), dtype=jnp.float32)

    ref = secat_reference(x, cat_feature, w1, w2)

    # 1) Default: tiny input -> collapsed grid, batched FC chain (Bt = B).
    out = jax.block_until_ready(secat_layer(x, cat_feature, w1, w2))
    assert out.shape == (B, C, H, W)
    assert jnp.allclose(out, ref, atol=1e-4, rtol=1e-4), "mismatch (default)"

    # 2) Explicit 2-step grid (v7x dual-TensorCore path), one batch per step.
    out2 = jax.block_until_ready(
        secat_layer(x, cat_feature, w1, w2, batch_blocks=2))
    assert jnp.allclose(out2, ref, atol=1e-4, rtol=1e-4), "mismatch (batch_blocks=2)"

    # 3) bf16 x / bf16 output (gate math stays f32) -- the HBM-bandwidth lever.
    x_bf = x.astype(jnp.bfloat16)
    out_bf = jax.block_until_ready(secat_layer(x_bf, cat_feature, w1, w2))
    ref_bf = secat_reference(x_bf.astype(jnp.float32), cat_feature, w1, w2)
    assert out_bf.dtype == jnp.bfloat16
    assert jnp.allclose(out_bf.astype(jnp.float32), ref_bf,
                        atol=5e-2, rtol=5e-2), "mismatch (bf16)"

    # 4) Non-128-multiple spatial size -> wrapper pads HW, mean stays exact.
    x7 = jax.random.normal(kx2, (B, C, 7, 7), dtype=jnp.float32)
    out7 = jax.block_until_ready(secat_layer(x7, cat_feature, w1, w2))
    ref7 = secat_reference(x7, cat_feature, w1, w2)
    assert jnp.allclose(out7, ref7, atol=1e-4, rtol=1e-4), "mismatch (HW=49)"

    # 5) Larger input -> auto heuristic picks a multi-step pipelined grid.
    xb = jax.random.normal(kx, (8, C, 32, 32), dtype=jnp.float32)
    cb = jax.random.normal(kc, (8, CAT_C), dtype=jnp.float32)
    outb = jax.block_until_ready(secat_layer(xb, cb, w1, w2))
    refb = secat_reference(xb, cb, w1, w2)
    assert jnp.allclose(outb, refb, atol=1e-4, rtol=1e-4), "mismatch (multi-step)"

    print("KERNEL_OK")
</pallas_src>

<mosaic_0001>
module attributes {stable_mosaic.version = 11 : i64} {
  func.func @kernel(%arg0: i32, %arg1: memref<2x64x256xf32, #tpu.memory_space<vmem>>, %arg2: memref<2x16xf32, #tpu.memory_space<vmem>>, %arg3: memref<4x64xf32, #tpu.memory_space<vmem>>, %arg4: memref<4x16xf32, #tpu.memory_space<vmem>>, %arg5: memref<64x4xf32, #tpu.memory_space<vmem>>, %arg6: memref<2x64x256xf32, #tpu.memory_space<vmem>>) attributes {dimension_semantics = [#tpu.dimension_semantics<parallel>], iteration_bounds = array<i64: 1>, scalar_prefetch = 0 : i64, scratch_operands = 0 : i64, tpu.core_type = #tpu.core_type<tc>, window_params = [{transform_indices = @transform_0, window_bounds = array<i64: 2, 64, 256>}, {transform_indices = @transform_1, window_bounds = array<i64: 2, 16>}, {pipeline_mode = #tpu.pipeline_mode<synchronous>, transform_indices = @transform_2, window_bounds = array<i64: 4, 64>}, {pipeline_mode = #tpu.pipeline_mode<synchronous>, transform_indices = @transform_3, window_bounds = array<i64: 4, 16>}, {pipeline_mode = #tpu.pipeline_mode<synchronous>, transform_indices = @transform_4, window_bounds = array<i64: 64, 4>}, {transform_indices = @transform_5, window_bounds = array<i64: 2, 64, 256>}]} {
    %c0 = arith.constant 0 : index
    %c0_0 = arith.constant 0 : index
    %c0_1 = arith.constant 0 : index
    %0 = vector.load %arg1[%c0, %c0_0, %c0_1] : memref<2x64x256xf32, #tpu.memory_space<vmem>>, vector<2x64x256xf32>
    %cst = arith.constant dense<0.000000e+00> : vector<2x64xf32>
    %1 = vector.multi_reduction <add>, %0, %cst [2] : vector<2x64x256xf32> to vector<2x64xf32>
    %cst_2 = arith.constant 3.906250e-03 : f32
    %2 = vector.broadcast %cst_2 : f32 to vector<2x64xf32>
    %3 = arith.mulf %1, %2 : vector<2x64xf32>
    %c0_3 = arith.constant 0 : index
    %c0_4 = arith.constant 0 : index
    %4 = vector.load %arg3[%c0_3, %c0_4] : memref<4x64xf32, #tpu.memory_space<vmem>>, vector<4x64xf32>
    %cst_5 = arith.constant dense<0.000000e+00> : vector<4x2xf32>
    %5 = tpu.matmul %4, %3, %cst_5 {dimension_numbers = #tpu.dot_dimension_numbers<[1], [1], [0], [0], [0, 0, 1, 0], [], []>} : vector<4x64xf32>, vector<2x64xf32>, vector<4x2xf32> -> vector<4x2xf32>
    %c0_6 = arith.constant 0 : index
    %c0_7 = arith.constant 0 : index
    %6 = vector.load %arg4[%c0_6, %c0_7] : memref<4x16xf32, #tpu.memory_space<vmem>>, vector<4x16xf32>
    %c0_8 = arith.constant 0 : index
    %c0_9 = arith.constant 0 : index
    %7 = vector.load %arg2[%c0_8, %c0_9] : memref<2x16xf32, #tpu.memory_space<vmem>>, vector<2x16xf32>
    %cst_10 = arith.constant dense<0.000000e+00> : vector<4x2xf32>
    %8 = tpu.matmul %6, %7, %cst_10 {dimension_numbers = #tpu.dot_dimension_numbers<[1], [1], [0], [0], [0, 0, 1, 0], [], []>} : vector<4x16xf32>, vector<2x16xf32>, vector<4x2xf32> -> vector<4x2xf32>
    %9 = arith.addf %5, %8 : vector<4x2xf32>
    %cst_11 = arith.constant 0.000000e+00 : f32
    %10 = vector.broadcast %cst_11 : f32 to vector<4x2xf32>
    %11 = arith.maximumf %9, %10 : vector<4x2xf32>
    %c0_12 = arith.constant 0 : index
    %c0_13 = arith.constant 0 : index
    %12 = vector.load %arg5[%c0_12, %c0_13] : memref<64x4xf32, #tpu.memory_space<vmem>>, vector<64x4xf32>
    %cst_14 = arith.constant dense<0.000000e+00> : vector<64x2xf32>
    %13 = tpu.matmul %12, %11, %cst_14 {dimension_numbers = #tpu.dot_dimension_numbers<[1], [0], [0], [1], [0, 0, 1, 1], [], []>} : vector<64x4xf32>, vector<4x2xf32>, vector<64x2xf32> -> vector<64x2xf32>
    %14 = arith.negf %13 : vector<64x2xf32>
    %15 = math.exp %14 : vector<64x2xf32>
    %cst_15 = arith.constant 1.000000e+00 : f32
    %16 = vector.broadcast %cst_15 : f32 to vector<64x2xf32>
    %17 = arith.addf %16, %15 : vector<64x2xf32>
    %18 = arith.divf %16, %17 : vector<64x2xf32>
    %c0_16 = arith.constant 0 : index
    %c0_17 = arith.constant 0 : index
    %c0_18 = arith.constant 0 : index
    %19 = vector.load %arg1[%c0_16, %c0_17, %c0_18] : memref<2x64x256xf32, #tpu.memory_space<vmem>>, vector<1x64x256xf32>
    %20 = vector.shape_cast %19 : vector<1x64x256xf32> to vector<64x256xf32>
    %21 = vector.extract_strided_slice %18 {offsets = [0, 0], sizes = [64, 1], strides = [1, 1]} : vector<64x2xf32> to vector<64x1xf32>
    %22 = vector.broadcast %21 : vector<64x1xf32> to vector<64x256xf32>
    %23 = arith.mulf %20, %22 : vector<64x256xf32>
    %c0_19 = arith.constant 0 : index
    %c0_20 = arith.constant 0 : index
    %c0_21 = arith.constant 0 : index
    %24 = vector.load %arg6[%c0_19, %c0_20, %c0_21] : memref<2x64x256xf32, #tpu.memory_space<vmem>>, vector<1x64x256xf32>
    %25 = vector.shape_cast %24 : vector<1x64x256xf32> to vector<64x256xf32>
    %26 = vector.shape_cast %23 : vector<64x256xf32> to vector<1x64x256xf32>
    tpu.vector_store %arg6[%c0_19, %c0_20, %c0_21], %26 {strides = array<i32>} : memref<2x64x256xf32, #tpu.memory_space<vmem>>, vector<1x64x256xf32>,
    %c1 = arith.constant 1 : index
    %c0_22 = arith.constant 0 : index
    %c0_23 = arith.constant 0 : index
    %27 = vector.load %arg1[%c1, %c0_22, %c0_23] : memref<2x64x256xf32, #tpu.memory_space<vmem>>, vector<1x64x256xf32>
    %28 = vector.shape_cast %27 : vector<1x64x256xf32> to vector<64x256xf32>
    %29 = vector.extract_strided_slice %18 {offsets = [0, 1], sizes = [64, 1], strides = [1, 1]} : vector<64x2xf32> to vector<64x1xf32>
    %30 = vector.broadcast %29 : vector<64x1xf32> to vector<64x256xf32>
    %31 = arith.mulf %28, %30 : vector<64x256xf32>
    %c1_24 = arith.constant 1 : index
    %c0_25 = arith.constant 0 : index
    %c0_26 = arith.constant 0 : index
    %32 = vector.load %arg6[%c1_24, %c0_25, %c0_26] : memref<2x64x256xf32, #tpu.memory_space<vmem>>, vector<1x64x256xf32>
    %33 = vector.shape_cast %32 : vector<1x64x256xf32> to vector<64x256xf32>
    %34 = vector.shape_cast %31 : vector<64x256xf32> to vector<1x64x256xf32>
    tpu.vector_store %arg6[%c1_24, %c0_25, %c0_26], %34 {strides = array<i32>} : memref<2x64x256xf32, #tpu.memory_space<vmem>>, vector<1x64x256xf32>,
    return
  }
  func.func @transform_0(%arg0: i32) -> (i32, i32, i32) {
    %c0_i32 = arith.constant 0 : i32
    %c0_i32_0 = arith.constant 0 : i32
    %c0_i32_1 = arith.constant 0 : i32
    return %arg0, %c0_i32, %c0_i32_0 : i32, i32, i32
  }
  func.func @transform_1(%arg0: i32) -> (i32, i32) {
    %c0_i32 = arith.constant 0 : i32
    %c0_i32_0 = arith.constant 0 : i32
    return %arg0, %c0_i32 : i32, i32
  }
  func.func @transform_2(%arg0: i32) -> (i32, i32) {
    %c0_i32 = arith.constant 0 : i32
    %c0_i32_0 = arith.constant 0 : i32
    %c0_i32_1 = arith.constant 0 : i32
    return %c0_i32, %c0_i32_0 : i32, i32
  }
  func.func @transform_3(%arg0: i32) -> (i32, i32) {
    %c0_i32 = arith.constant 0 : i32
    %c0_i32_0 = arith.constant 0 : i32
    %c0_i32_1 = arith.constant 0 : i32
    return %c0_i32, %c0_i32_0 : i32, i32
  }
  func.func @transform_4(%arg0: i32) -> (i32, i32) {
    %c0_i32 = arith.constant 0 : i32
    %c0_i32_0 = arith.constant 0 : i32
    %c0_i32_1 = arith.constant 0 : i32
    return %c0_i32, %c0_i32_0 : i32, i32
  }
  func.func @transform_5(%arg0: i32) -> (i32, i32, i32) {
    %c0_i32 = arith.constant 0 : i32
    %c0_i32_0 = arith.constant 0 : i32
    %c0_i32_1 = arith.constant 0 : i32
    return %arg0, %c0_i32, %c0_i32_0 : i32, i32, i32
  }
}

</mosaic_0001>

<llo_original>
// kernel: tpu_custom_call.1
$region0: #{tpu_custom_call.1}
  #allocation0 [shape = 'u32[]', space=smem, size = 0x4, offset = 0x4, fixed_abs, tag = 'smem constant byte address 0x4 - core index']
  #allocation1 [shape = 'u32[144,128]{1,0:T(1,128)}', space=vmem, size = 0x12000, scoped, tag = 'internal scratch']
  %s0 = inlined_call_operand.hbm [shape: f32[2,64,256], index: 0, kind: input, shape index: {}]
  %s1 = inlined_call_operand.vmem [shape: f32[2,16], index: 1, kind: input, shape index: {}]
  %s2 = inlined_call_operand.vmem [shape: f32[4,64], index: 2, kind: input, shape index: {}]
  %s3 = inlined_call_operand.vmem [shape: f32[4,16], index: 3, kind: input, shape index: {}]
  %s4 = inlined_call_operand.vmem [shape: f32[64,4], index: 4, kind: input, shape index: {}]
  %s5 = inlined_call_operand.hbm [shape: f32[2,64,256], index: 5, kind: output, shape index: {}]
  %s6 = sld [smem:[#allocation0]]
  $region34: #{tpu_custom_call.1} parent=0
    _
  %s8 = ssub.s32 1, %s6
  %s9 = scalar_select 0, %s8, %s6
  $region1: #{tpu_custom_call.1} parent=0
    #allocation2 [shape = 'u8[131072]{0}', space=vmem, size = 0x20000, scoped, tag = 'input window, operand 0, single buffered']
    #allocation3 [shape = 's32[1]{0}', space=sflag, size = 0x4, scoped, tag = 'scoped memory for tpu_custom_call.1']
    #allocation4 [shape = 's32[1]{0}', space=sflag, size = 0x4, scoped, tag = 'scoped memory for tpu_custom_call.1']
    #allocation5 [shape = 'u8[131072]{0}', space=vmem, size = 0x20000, scoped, tag = 'output window, operand 0, single buffered']
    %10 = vsyncpa [#allocation3], 0
    %11 = vsyncpa [#allocation4], 0
    // Predicated region
    $region2: #{tpu_custom_call.1} parent=1 // pred_check
      _
    $region3: #{tpu_custom_call.1} parent=1 // pred_check_branch
      %13 = sbr.rel (0) target = $region5
    $region4: #{tpu_custom_call.1} parent=1 // pred_region
      %s15 = ssub.s32 4096, 4096
      %16 = vsyncadd [#allocation3], %s15
      %s17 = sshll.u32 [#allocation2], 4
      %s18 = int_to_ptr.vmem [resolvable:$true] %s17
      %23 = dma.hbm_to_vmem [thread:$0]  %s0, 4096, %s18, [#allocation3], 256, 256, 16
    $region5: #{tpu_custom_call.1} parent=1 // pred_fallthru
      _
    // Predicated region
    $region6: #{tpu_custom_call.1} parent=1 // pred_check
      _
    $region7: #{tpu_custom_call.1} parent=1 // pred_check_branch
      %25 = sbr.rel (0) target = $region9
    $region8: #{tpu_custom_call.1} parent=1 // pred_region
      _
    $region9: #{tpu_custom_call.1} parent=1 // pred_fallthru
      _
    // Predicated region
    $region10: #{tpu_custom_call.1} parent=1 // pred_check
      _
    $region11: #{tpu_custom_call.1} parent=1 // pred_check_branch
      %27 = sbr.rel (0) target = $region13
    $region12: #{tpu_custom_call.1} parent=1 // pred_region
      _
    $region13: #{tpu_custom_call.1} parent=1 // pred_fallthru
      _
    // Predicated region
    $region14: #{tpu_custom_call.1} parent=1 // pred_check
      _
    $region15: #{tpu_custom_call.1} parent=1 // pred_check_branch
      %29 = sbr.rel (0) target = $region17
    $region16: #{tpu_custom_call.1} parent=1 // pred_region
      _
    $region17: #{tpu_custom_call.1} parent=1 // pred_fallthru
      _
    // Predicated region
    $region18: #{tpu_custom_call.1} parent=1 // pred_check
      _
    $region19: #{tpu_custom_call.1} parent=1 // pred_check_branch
      %31 = sbr.rel (0) target = $region21
    $region20: #{tpu_custom_call.1} parent=1 // pred_region
      _
    $region21: #{tpu_custom_call.1} parent=1 // pred_fallthru
      _
    // Predicated region
    $region22: #{tpu_custom_call.1} parent=1 // pred_check
      _
    $region23: #{tpu_custom_call.1} parent=1 // pred_check_branch
      %33 = sbr.rel (0) target = $region25
    $region24: #{tpu_custom_call.1} parent=1 // pred_region
      %34 = dma.done [#allocation3], 4096
    $region25: #{tpu_custom_call.1} parent=1 // pred_fallthru
      _
    %v35 = vld [vmem:[#allocation2] sm:$0xff]
    %v36 = vld [vmem:[#allocation2 + $0x8] sm:$0xff]
    %v37 = vld [vmem:[#allocation2 + $0x10] sm:$0xff]
    %v38 = vld [vmem:[#allocation2 + $0x18] sm:$0xff]
    %v39 = vld [vmem:[#allocation2 + $0x20] sm:$0xff]
    %v40 = vld [vmem:[#allocation2 + $0x28] sm:$0xff]
    %v41 = vld [vmem:[#allocation2 + $0x30] sm:$0xff]
    %v42 = vld [vmem:[#allocation2 + $0x38] sm:$0xff]
    %v43 = vld [vmem:[#allocation2 + $0x40] sm:$0xff]
    %v44 = vld [vmem:[#allocation2 + $0x48] sm:$0xff]
    %v45 = vld [vmem:[#allocation2 + $0x50] sm:$0xff]
    %v46 = vld [vmem:[#allocation2 + $0x58] sm:$0xff]
    %v47 = vld [vmem:[#allocation2 + $0x60] sm:$0xff]
    %v48 = vld [vmem:[#allocation2 + $0x68] sm:$0xff]
    %v49 = vld [vmem:[#allocation2 + $0x70] sm:$0xff]
    %v50 = vld [vmem:[#allocation2 + $0x78] sm:$0xff]
    %v51 = vld [vmem:[#allocation2 + $0x80] sm:$0xff]
    %v52 = vld [vmem:[#allocation2 + $0x88] sm:$0xff]
    %v53 = vld [vmem:[#allocation2 + $0x90] sm:$0xff]
    %v54 = vld [vmem:[#allocation2 + $0x98] sm:$0xff]
    %v55 = vld [vmem:[#allocation2 + $0xa0] sm:$0xff]
    %v56 = vld [vmem:[#allocation2 + $0xa8] sm:$0xff]
    %v57 = vld [vmem:[#allocation2 + $0xb0] sm:$0xff]
    %v58 = vld [vmem:[#allocation2 + $0xb8] sm:$0xff]
    %v59 = vld [vmem:[#allocation2 + $0xc0] sm:$0xff]
    %v60 = vld [vmem:[#allocation2 + $0xc8] sm:$0xff]
    %v61 = vld [vmem:[#allocation2 + $0xd0] sm:$0xff]
    %v62 = vld [vmem:[#allocation2 + $0xd8] sm:$0xff]
    %v63 = vld [vmem:[#allocation2 + $0xe0] sm:$0xff]
    %v64 = vld [vmem:[#allocation2 + $0xe8] sm:$0xff]
    %v65 = vld [vmem:[#allocation2 + $0xf0] sm:$0xff]
    %v66 = vld [vmem:[#allocation2 + $0xf8] sm:$0xff]
    %v67 = vadd.f32 %v35, %v36
    %68 = vadd.xlane.f32.xlu0 %v67
    %v69 = vpop.xlane.xlu0 %68
    %v70 = vadd.f32 %v37, %v38
    %71 = vadd.xlane.f32.xlu0 %v70
    %v72 = vpop.xlane.xlu0 %71
    %v73 = vadd.f32 %v39, %v40
    %74 = vadd.xlane.f32.xlu0 %v73
    %v75 = vpop.xlane.xlu0 %74
    %v76 = vadd.f32 %v41, %v42
    %77 = vadd.xlane.f32.xlu0 %v76
    %v78 = vpop.xlane.xlu0 %77
    %v79 = vadd.f32 %v43, %v44
    %80 = vadd.xlane.f32.xlu0 %v79
    %v81 = vpop.xlane.xlu0 %80
    %v82 = vadd.f32 %v45, %v46
    %83 = vadd.xlane.f32.xlu0 %v82
    %v84 = vpop.xlane.xlu0 %83
    %v85 = vadd.f32 %v47, %v48
    %86 = vadd.xlane.f32.xlu0 %v85
    %v87 = vpop.xlane.xlu0 %86
    %v88 = vadd.f32 %v49, %v50
    %89 = vadd.xlane.f32.xlu0 %v88
    %v90 = vpop.xlane.xlu0 %89
    %v91 = vadd.f32 %v51, %v52
    %92 = vadd.xlane.f32.xlu0 %v91
    %v93 = vpop.xlane.xlu0 %92
    %v94 = vadd.f32 %v53, %v54
    %95 = vadd.xlane.f32.xlu0 %v94
    %v96 = vpop.xlane.xlu0 %95
    %v97 = vadd.f32 %v55, %v56
    %98 = vadd.xlane.f32.xlu0 %v97
    %v99 = vpop.xlane.xlu0 %98
    %v100 = vadd.f32 %v57, %v58
    %101 = vadd.xlane.f32.xlu0 %v100
    %v102 = vpop.xlane.xlu0 %101
    %v103 = vadd.f32 %v59, %v60
    %104 = vadd.xlane.f32.xlu0 %v103
    %v105 = vpop.xlane.xlu0 %104
    %v106 = vadd.f32 %v61, %v62
    %107 = vadd.xlane.f32.xlu0 %v106
    %v108 = vpop.xlane.xlu0 %107
    %v109 = vadd.f32 %v63, %v64
    %110 = vadd.xlane.f32.xlu0 %v109
    %v111 = vpop.xlane.xlu0 %110
    %v112 = vadd.f32 %v65, %v66
    %113 = vadd.xlane.f32.xlu0 %v112
    %v114 = vpop.xlane.xlu0 %113
    %v115 = vmul.f32 %v69, 0.00390625
    %v116 = vmul.f32 %v72, 0.00390625
    %v117 = vmul.f32 %v75, 0.00390625
    %v118 = vmul.f32 %v78, 0.00390625
    %v119 = vmul.f32 %v81, 0.00390625
    %v120 = vmul.f32 %v84, 0.00390625
    %v121 = vmul.f32 %v87, 0.00390625
    %v122 = vmul.f32 %v90, 0.00390625
    %v123 = vmul.f32 %v93, 0.00390625
    %v124 = vmul.f32 %v96, 0.00390625
    %v125 = vmul.f32 %v99, 0.00390625
    %v126 = vmul.f32 %v102, 0.00390625
    %v127 = vmul.f32 %v105, 0.00390625
    %v128 = vmul.f32 %v108, 0.00390625
    %v129 = vmul.f32 %v111, 0.00390625
    %v130 = vmul.f32 %v114, 0.00390625
    %v131 = vld [vmem:[%s2] sm:$0xf]
    %v132 = vld [vmem:[%s3] sm:$0xf]
    %v133 = vld [vmem:[%s1] sm:$0x3]
    %vm134 = vcmask 130048
    %v136 = vsel %vm134, %v132, 0
    %v139 = vsel %vm134, %v133, 0
    %141 = vmatprep.subr.mxu0 0.0
    %142 = vmatpush1.xpose.msra.mxu0 %v139
    %143 = vmatprep.subr.mxu0 0.0
    %144 = vmatpush1.xpose.msra.mxu0 0.0
    %145 = vmatprep.subr.mxu0 0.0
    %146 = vmatpush1.xpose.msra.mxu0 0.0
    %147 = vmatprep.subr.mxu0 0.0
    %148 = vmatpush1.xpose.msra.mxu0 0.0
    %149 = vmatprep.subr.mxu0 0.0
    %150 = vmatpush1.xpose.msra.mxu0 0.0
    %151 = vmatprep.subr.mxu0 0.0
    %152 = vmatpush1.xpose.msra.mxu0 0.0
    %153 = vmatprep.subr.mxu0 0.0
    %154 = vmatpush1.xpose.msra.mxu0 0.0
    %155 = vmatprep.subr.mxu0 0.0
    %156 = vmatpush1.xpose.msra.mxu0 0.0
    %157 = vmatprep.subr.mxu0 0.0
    %158 = vmatpush1.xpose.msra.mxu0 0.0
    %159 = vmatprep.subr.mxu0 0.0
    %160 = vmatpush1.xpose.msra.mxu0 0.0
    %161 = vmatprep.subr.mxu0 0.0
    %162 = vmatpush1.xpose.msra.mxu0 0.0
    %163 = vmatprep.subr.mxu0 0.0
    %164 = vmatpush1.xpose.msra.mxu0 0.0
    %165 = vmatprep.subr.mxu0 0.0
    %166 = vmatpush1.xpose.msra.mxu0 0.0
    %167 = vmatprep.subr.mxu0 0.0
    %168 = vmatpush1.xpose.msra.mxu0 0.0
    %169 = vmatprep.subr.mxu0 0.0
    %170 = vmatpush1.xpose.msra.mxu0 0.0
    %171 = vmatprep.subr.mxu0 0.0
    %172 = vmatpush1.xpose.msra.mxu0 0.0
    %173 = vmatprep.subr.mxu0 0.0
    %174 = vmatpush1.xpose.msra.mxu0 0.0
    %175 = vmatprep.subr.mxu0 0.0
    %176 = vmatpush1.xpose.msra.mxu0 0.0
    %177 = vmatprep.subr.mxu0 0.0
    %178 = vmatpush1.xpose.msra.mxu0 0.0
    %179 = vmatprep.subr.mxu0 0.0
    %180 = vmatpush1.xpose.msra.mxu0 0.0
    %181 = vmatprep.subr.mxu0 0.0
    %182 = vmatpush1.xpose.msra.mxu0 0.0
    %183 = vmatprep.subr.mxu0 0.0
    %184 = vmatpush1.xpose.msra.mxu0 0.0
    %185 = vmatprep.subr.mxu0 0.0
    %186 = vmatpush1.xpose.msra.mxu0 0.0
    %187 = vmatprep.subr.mxu0 0.0
    %188 = vmatpush1.xpose.msra.mxu0 0.0
    %189 = vmatprep.subr.mxu0 0.0
    %190 = vmatpush1.xpose.msra.mxu0 0.0
    %191 = vmatprep.subr.mxu0 0.0
    %192 = vmatpush1.xpose.msra.mxu0 0.0
    %193 = vmatprep.subr.mxu0 0.0
    %194 = vmatpush1.xpose.msra.mxu0 0.0
    %195 = vmatprep.subr.mxu0 0.0
    %196 = vmatpush1.xpose.msra.mxu0 0.0
    %197 = vmatprep.subr.mxu0 0.0
    %198 = vmatpush1.xpose.msra.mxu0 0.0
    %199 = vmatprep.subr.mxu0 0.0
    %200 = vmatpush1.xpose.msra.mxu0 0.0
    %201 = vmatprep.subr.mxu0 0.0
    %202 = vmatpush1.xpose.msra.mxu0 0.0
    %203 = vmatprep.subr.mxu0 0.0
    %204 = vmatpush1.xpose.msra.mxu0 0.0
    %205 = vmatprep.mubr.f32.mxu0 0.0
    %206 = vmatmul.mubr.f32.gmra.mrb[0].mxu0 %v136
    %v207 = vpop.f32.mrb[0].mxu0
    %v208 = vadd.f32 0.0, %v207
    %v209 = vpop.f32.mrb[0].mxu0
    %210 = vdwg.mxu0
    %v227 = vlaneseq
    %v228 = vand.u32 %v227, 127
    %v229 = vlaneseq
    %v230 = vshrl.u32 %v229, 7
    %v231 = vsub.s32 %v228, %v230
    %v232 = vrot.slane %v115, %v231
    %v233 = vadd.s32 %v228, 4294967288
    %v234 = vlaneseq
    %v235 = vshrl.u32 %v234, 7
    %v236 = vsub.s32 %v233, %v235
    %v237 = vrot.slane %v116, %v236
    %vm238 = vcmask 130112
    %v239 = vsel %vm238, %v237, %v232
    %v240 = vadd.s32 %v228, 4294967280
    %v241 = vlaneseq
    %v242 = vshrl.u32 %v241, 7
    %v243 = vsub.s32 %v240, %v242
    %v244 = vrot.slane %v117, %v243
    %vm245 = vcmask 195712
    %v246 = vsel %vm245, %v244, %v239
    %v247 = vadd.s32 %v228, 4294967272
    %v248 = vlaneseq
    %v249 = vshrl.u32 %v248, 7
    %v250 = vsub.s32 %v247, %v249
    %v251 = vrot.slane %v118, %v250
    %vm252 = vcmask 261312
    %v253 = vsel %vm252, %v251, %v246
    %v254 = vadd.s32 %v228, 4294967264
    %v255 = vlaneseq
    %v256 = vshrl.u32 %v255, 7
    %v257 = vsub.s32 %v254, %v256
    %v258 = vrot.slane %v119, %v257
    %vm259 = vcmask 326912
    %v260 = vsel %vm259, %v258, %v253
    %v261 = vadd.s32 %v228, 4294967256
    %v262 = vlaneseq
    %v263 = vshrl.u32 %v262, 7
    %v264 = vsub.s32 %v261, %v263
    %v265 = vrot.slane %v120, %v264
    %vm266 = vcmask 392512
    %v267 = vsel %vm266, %v265, %v260
    %v268 = vadd.s32 %v228, 4294967248
    %v269 = vlaneseq
    %v270 = vshrl.u32 %v269, 7
    %v271 = vsub.s32 %v268, %v270
    %v272 = vrot.slane %v121, %v271
    %vm273 = vcmask 458112
    %v274 = vsel %vm273, %v272, %v267
    %v275 = vadd.s32 %v228, 4294967240
    %v276 = vlaneseq
    %v277 = vshrl.u32 %v276, 7
    %v278 = vsub.s32 %v275, %v277
    %v279 = vrot.slane %v122, %v278
    %vm280 = vcmask 523712
    %v281 = vsel %vm280, %v279, %v274
    %v282 = vlaneseq
    %v283 = vshrl.u32 %v282, 7
    %v284 = vsub.s32 %v228, %v283
    %v285 = vrot.slane %v123, %v284
    %v286 = vlaneseq
    %v287 = vshrl.u32 %v286, 7
    %v288 = vsub.s32 %v233, %v287
    %v289 = vrot.slane %v124, %v288
    %v290 = vsel %vm238, %v289, %v285
    %v291 = vlaneseq
    %v292 = vshrl.u32 %v291, 7
    %v293 = vsub.s32 %v240, %v292
    %v294 = vrot.slane %v125, %v293
    %v295 = vsel %vm245, %v294, %v290
    %v296 = vlaneseq
    %v297 = vshrl.u32 %v296, 7
    %v298 = vsub.s32 %v247, %v297
    %v299 = vrot.slane %v126, %v298
    %v300 = vsel %vm252, %v299, %v295
    %v301 = vlaneseq
    %v302 = vshrl.u32 %v301, 7
    %v303 = vsub.s32 %v254, %v302
    %v304 = vrot.slane %v127, %v303
    %v305 = vsel %vm259, %v304, %v300
    %v306 = vlaneseq
    %v307 = vshrl.u32 %v306, 7
    %v308 = vsub.s32 %v261, %v307
    %v309 = vrot.slane %v128, %v308
    %v310 = vsel %vm266, %v309, %v305
    %v311 = vlaneseq
    %v312 = vshrl.u32 %v311, 7
    %v313 = vsub.s32 %v268, %v312
    %v314 = vrot.slane %v129, %v313
    %v315 = vsel %vm273, %v314, %v310
    %v316 = vlaneseq
    %v317 = vshrl.u32 %v316, 7
    %v318 = vsub.s32 %v275, %v317
    %v319 = vrot.slane %v130, %v318
    %v320 = vsel %vm280, %v319, %v315
    %vm321 = vcmask 1041409
    %v322 = vsel %vm321, %v320, %v281
    %vm323 = vcmask 523264
    %v325 = vsel %vm323, %v131, 0
    %v327 = vsel %vm323, %v322, 0
    %329 = vmatprep.subr.mxu0 0.0
    %330 = vmatpush1.xpose.msra.mxu0 %v327
    %331 = vmatprep.subr.mxu0 0.0
    %332 = vmatpush1.xpose.msra.mxu0 0.0
    %333 = vmatprep.subr.mxu0 0.0
    %334 = vmatpush1.xpose.msra.mxu0 0.0
    %335 = vmatprep.subr.mxu0 0.0
    %336 = vmatpush1.xpose.msra.mxu0 0.0
    %337 = vmatprep.subr.mxu0 0.0
    %338 = vmatpush1.xpose.msra.mxu0 0.0
    %339 = vmatprep.subr.mxu0 0.0
    %340 = vmatpush1.xpose.msra.mxu0 0.0
    %341 = vmatprep.subr.mxu0 0.0
    %342 = vmatpush1.xpose.msra.mxu0 0.0
    %343 = vmatprep.subr.mxu0 0.0
    %344 = vmatpush1.xpose.msra.mxu0 0.0
    %345 = vmatprep.subr.mxu0 0.0
    %346 = vmatpush1.xpose.msra.mxu0 0.0
    %347 = vmatprep.subr.mxu0 0.0
    %348 = vmatpush1.xpose.msra.mxu0 0.0
    %349 = vmatprep.subr.mxu0 0.0
    %350 = vmatpush1.xpose.msra.mxu0 0.0
    %351 = vmatprep.subr.mxu0 0.0
    %352 = vmatpush1.xpose.msra.mxu0 0.0
    %353 = vmatprep.subr.mxu0 0.0
    %354 = vmatpush1.xpose.msra.mxu0 0.0
    %355 = vmatprep.subr.mxu0 0.0
    %356 = vmatpush1.xpose.msra.mxu0 0.0
    %357 = vmatprep.subr.mxu0 0.0
    %358 = vmatpush1.xpose.msra.mxu0 0.0
    %359 = vmatprep.subr.mxu0 0.0
    %360 = vmatpush1.xpose.msra.mxu0 0.0
    %361 = vmatprep.subr.mxu0 0.0
    %362 = vmatpush1.xpose.msra.mxu0 0.0
    %363 = vmatprep.subr.mxu0 0.0
    %364 = vmatpush1.xpose.msra.mxu0 0.0
    %365 = vmatprep.subr.mxu0 0.0
    %366 = vmatpush1.xpose.msra.mxu0 0.0
    %367 = vmatprep.subr.mxu0 0.0
    %368 = vmatpush1.xpose.msra.mxu0 0.0
    %369 = vmatprep.subr.mxu0 0.0
    %370 = vmatpush1.xpose.msra.mxu0 0.0
    %371 = vmatprep.subr.mxu0 0.0
    %372 = vmatpush1.xpose.msra.mxu0 0.0
    %373 = vmatprep.subr.mxu0 0.0
    %374 = vmatpush1.xpose.msra.mxu0 0.0
    %375 = vmatprep.subr.mxu0 0.0
    %376 = vmatpush1.xpose.msra.mxu0 0.0
    %377 = vmatprep.subr.mxu0 0.0
    %378 = vmatpush1.xpose.msra.mxu0 0.0
    %379 = vmatprep.subr.mxu0 0.0
    %380 = vmatpush1.xpose.msra.mxu0 0.0
    %381 = vmatprep.subr.mxu0 0.0
    %382 = vmatpush1.xpose.msra.mxu0 0.0
    %383 = vmatprep.subr.mxu0 0.0
    %384 = vmatpush1.xpose.msra.mxu0 0.0
    %385 = vmatprep.subr.mxu0 0.0
    %386 = vmatpush1.xpose.msra.mxu0 0.0
    %387 = vmatprep.subr.mxu0 0.0
    %388 = vmatpush1.xpose.msra.mxu0 0.0
    %389 = vmatprep.subr.mxu0 0.0
    %390 = vmatpush1.xpose.msra.mxu0 0.0
    %391 = vmatprep.subr.mxu0 0.0
    %392 = vmatpush1.xpose.msra.mxu0 0.0
    %393 = vmatprep.mubr.f32.mxu0 0.0
    %394 = vmatmul.mubr.f32.gmra.mrb[0].mxu0 %v325
    %v395 = vpop.f32.mrb[0].mxu0
    %v396 = vadd.f32 %v208, %v395
    %v397 = vpop.f32.mrb[0].mxu0
    %398 = vdwg.mxu0
    %v399 = vmax.f32 %v396, 0.0
    %v400 = vld [vmem:[%s4] sm:$0xff]
    %v401 = vld [vmem:[%s4 + $0x8] sm:$0xff]
    %v402 = vld [vmem:[%s4 + $0x10] sm:$0xff]
    %v403 = vld [vmem:[%s4 + $0x18] sm:$0xff]
    %v404 = vld [vmem:[%s4 + $0x20] sm:$0xff]
    %v405 = vld [vmem:[%s4 + $0x28] sm:$0xff]
    %v406 = vld [vmem:[%s4 + $0x30] sm:$0xff]
    %v407 = vld [vmem:[%s4 + $0x38] sm:$0xff]
    %vm408 = vcmask 31744
    %v410 = vsel %vm408, %v400, 0
    %v413 = vsel %vm408, %v401, 0
    %v416 = vsel %vm408, %v402, 0
    %v419 = vsel %vm408, %v403, 0
    %v422 = vsel %vm408, %v404, 0
    %v425 = vsel %vm408, %v405, 0
    %v428 = vsel %vm408, %v406, 0
    %v431 = vsel %vm408, %v407, 0
    %vm433 = vcmask 1043456
    %v435 = vsel %vm433, %v399, 0
    %437 = vmatprep.subr.mxu0 0.0
    %438 = vmatpush1.msra.mxu0 %v435
    %439 = vmatprep.subr.mxu0 0.0
    %440 = vmatpush1.msra.mxu0 0.0
    %441 = vmatprep.subr.mxu0 0.0
    %442 = vmatpush1.msra.mxu0 0.0
    %443 = vmatprep.subr.mxu0 0.0
    %444 = vmatpush1.msra.mxu0 0.0
    %445 = vmatprep.subr.mxu0 0.0
    %446 = vmatpush1.msra.mxu0 0.0
    %447 = vmatprep.subr.mxu0 0.0
    %448 = vmatpush1.msra.mxu0 0.0
    %449 = vmatprep.subr.mxu0 0.0
    %450 = vmatpush1.msra.mxu0 0.0
    %451 = vmatprep.subr.mxu0 0.0
    %452 = vmatpush1.msra.mxu0 0.0
    %453 = vmatprep.subr.mxu0 0.0
    %454 = vmatpush1.msra.mxu0 0.0
    %455 = vmatprep.subr.mxu0 0.0
    %456 = vmatpush1.msra.mxu0 0.0
    %457 = vmatprep.subr.mxu0 0.0
    %458 = vmatpush1.msra.mxu0 0.0
    %459 = vmatprep.subr.mxu0 0.0
    %460 = vmatpush1.msra.mxu0 0.0
    %461 = vmatprep.subr.mxu0 0.0
    %462 = vmatpush1.msra.mxu0 0.0
    %463 = vmatprep.subr.mxu0 0.0
    %464 = vmatpush1.msra.mxu0 0.0
    %465 = vmatprep.subr.mxu0 0.0
    %466 = vmatpush1.msra.mxu0 0.0
    %467 = vmatprep.subr.mxu0 0.0
    %468 = vmatpush1.msra.mxu0 0.0
    %469 = vmatprep.subr.mxu0 0.0
    %470 = vmatpush1.msra.mxu0 0.0
    %471 = vmatprep.subr.mxu0 0.0
    %472 = vmatpush1.msra.mxu0 0.0
    %473 = vmatprep.subr.mxu0 0.0
    %474 = vmatpush1.msra.mxu0 0.0
    %475 = vmatprep.subr.mxu0 0.0
    %476 = vmatpush1.msra.mxu0 0.0
    %477 = vmatprep.subr.mxu0 0.0
    %478 = vmatpush1.msra.mxu0 0.0
    %479 = vmatprep.subr.mxu0 0.0
    %480 = vmatpush1.msra.mxu0 0.0
    %481 = vmatprep.subr.mxu0 0.0
    %482 = vmatpush1.msra.mxu0 0.0
    %483 = vmatprep.subr.mxu0 0.0
    %484 = vmatpush1.msra.mxu0 0.0
    %485 = vmatprep.subr.mxu0 0.0
    %486 = vmatpush1.msra.mxu0 0.0
    %487 = vmatprep.subr.mxu0 0.0
    %488 = vmatpush1.msra.mxu0 0.0
    %489 = vmatprep.subr.mxu0 0.0
    %490 = vmatpush1.msra.mxu0 0.0
    %491 = vmatprep.subr.mxu0 0.0
    %492 = vmatpush1.msra.mxu0 0.0
    %493 = vmatprep.subr.mxu0 0.0
    %494 = vmatpush1.msra.mxu0 0.0
    %495 = vmatprep.subr.mxu0 0.0
    %496 = vmatpush1.msra.mxu0 0.0
    %497 = vmatprep.subr.mxu0 0.0
    %498 = vmatpush1.msra.mxu0 0.0
    %499 = vmatprep.subr.mxu0 0.0
    %500 = vmatpush1.msra.mxu0 0.0
    %501 = vmatprep.mubr.f32.mxu0 0.0
    %502 = vmatmul.mubr.f32.gmra.mrb[0].mxu0 %v410
    %v503 = vpop.f32.mrb[0].mxu0
    %v504 = vadd.f32 0.0, %v503
    %v505 = vpop.f32.mrb[0].mxu0
    %506 = vmatprep.mubr.f32.mxu0 0.0
    %507 = vmatmul.mubr.f32.gmra.mrb[0].mxu0 %v413
    %v508 = vpop.f32.mrb[0].mxu0
    %v509 = vadd.f32 0.0, %v508
    %v510 = vpop.f32.mrb[0].mxu0
    %511 = vmatprep.mubr.f32.mxu0 0.0
    %512 = vmatmul.mubr.f32.gmra.mrb[0].mxu0 %v416
    %v513 = vpop.f32.mrb[0].mxu0
    %v514 = vadd.f32 0.0, %v513
    %v515 = vpop.f32.mrb[0].mxu0
    %516 = vmatprep.mubr.f32.mxu0 0.0
    %517 = vmatmul.mubr.f32.gmra.mrb[0].mxu0 %v419
    %v518 = vpop.f32.mrb[0].mxu0
    %v519 = vadd.f32 0.0, %v518
    %v520 = vpop.f32.mrb[0].mxu0
    %521 = vmatprep.mubr.f32.mxu0 0.0
    %522 = vmatmul.mubr.f32.gmra.mrb[0].mxu0 %v422
    %v523 = vpop.f32.mrb[0].mxu0
    %v524 = vadd.f32 0.0, %v523
    %v525 = vpop.f32.mrb[0].mxu0
    %526 = vmatprep.mubr.f32.mxu0 0.0
    %527 = vmatmul.mubr.f32.gmra.mrb[0].mxu0 %v425
    %v528 = vpop.f32.mrb[0].mxu0
    %v529 = vadd.f32 0.0, %v528
    %v530 = vpop.f32.mrb[0].mxu0
    %531 = vmatprep.mubr.f32.mxu0 0.0
    %532 = vmatmul.mubr.f32.gmra.mrb[0].mxu0 %v428
    %v533 = vpop.f32.mrb[0].mxu0
    %v534 = vadd.f32 0.0, %v533
    %v535 = vpop.f32.mrb[0].mxu0
    %536 = vmatprep.mubr.f32.mxu0 0.0
    %537 = vmatmul.mubr.f32.gmra.mrb[0].mxu0 %v431
    %v538 = vpop.f32.mrb[0].mxu0
    %v539 = vadd.f32 0.0, %v538
    %v540 = vpop.f32.mrb[0].mxu0
    %541 = vdwg.mxu0
    %v542 = vxor.u32 %v504, 2147483648
    %v543 = vxor.u32 %v509, 2147483648
    %v544 = vxor.u32 %v514, 2147483648
    %v545 = vxor.u32 %v519, 2147483648
    %v546 = vxor.u32 %v524, 2147483648
    %v547 = vxor.u32 %v529, 2147483648
    %v548 = vxor.u32 %v534, 2147483648
    %v549 = vxor.u32 %v539, 2147483648
    %v550 = vmul.f32 %v542, 1.442695
    %v551 = vpow.pop %v550
    %v552 = vmul.f32 %v543, 1.442695
    %v553 = vpow.pop %v552
    %v554 = vmul.f32 %v544, 1.442695
    %v555 = vpow.pop %v554
    %v556 = vmul.f32 %v545, 1.442695
    %v557 = vpow.pop %v556
    %v558 = vmul.f32 %v546, 1.442695
    %v559 = vpow.pop %v558
    %v560 = vmul.f32 %v547, 1.442695
    %v561 = vpow.pop %v560
    %v562 = vmul.f32 %v548, 1.442695
    %v563 = vpow.pop %v562
    %v564 = vmul.f32 %v549, 1.442695
    %v565 = vpow.pop %v564
    %v566 = vadd.f32 %v551, 1.0
    %v567 = vadd.f32 %v553, 1.0
    %v568 = vadd.f32 %v555, 1.0
    %v569 = vadd.f32 %v557, 1.0
    %v570 = vadd.f32 %v559, 1.0
    %v571 = vadd.f32 %v561, 1.0
    %v572 = vadd.f32 %v563, 1.0
    %v573 = vadd.f32 %v565, 1.0
    %v574 = vrcp.pop %v566
    %v575 = vmul.f32 1.0, %v574
    %v576 = vrcp.pop %v567
    %v577 = vmul.f32 1.0, %v576
    %v578 = vrcp.pop %v568
    %v579 = vmul.f32 1.0, %v578
    %v580 = vrcp.pop %v569
    %v581 = vmul.f32 1.0, %v580
    %v582 = vrcp.pop %v570
    %v583 = vmul.f32 1.0, %v582
    %v584 = vrcp.pop %v571
    %v585 = vmul.f32 1.0, %v584
    %v586 = vrcp.pop %v572
    %v587 = vmul.f32 1.0, %v586
    %v588 = vrcp.pop %v573
    %v589 = vmul.f32 1.0, %v588
    %v590 = vld [vmem:[#allocation2] sm:$0xff]
    %v591 = vld [vmem:[#allocation2 + $0x8] sm:$0xff]
    %v592 = vld [vmem:[#allocation2 + $0x10] sm:$0xff]
    %v593 = vld [vmem:[#allocation2 + $0x18] sm:$0xff]
    %v594 = vld [vmem:[#allocation2 + $0x20] sm:$0xff]
    %v595 = vld [vmem:[#allocation2 + $0x28] sm:$0xff]
    %v596 = vld [vmem:[#allocation2 + $0x30] sm:$0xff]
    %v597 = vld [vmem:[#allocation2 + $0x38] sm:$0xff]
    %v598 = vld [vmem:[#allocation2 + $0x40] sm:$0xff]
    %v599 = vld [vmem:[#allocation2 + $0x48] sm:$0xff]
    %v600 = vld [vmem:[#allocation2 + $0x50] sm:$0xff]
    %v601 = vld [vmem:[#allocation2 + $0x58] sm:$0xff]
    %v602 = vld [vmem:[#allocation2 + $0x60] sm:$0xff]
    %v603 = vld [vmem:[#allocation2 + $0x68] sm:$0xff]
    %v604 = vld [vmem:[#allocation2 + $0x70] sm:$0xff]
    %v605 = vld [vmem:[#allocation2 + $0x78] sm:$0xff]
    %607 = vset.pattern.permute.xlu0 0
    %608 = vperm.xlu0 %607, %v575
    %v609 = vpop.permute.xlu0 %608
    %612 = vset.pattern.permute.xlu0 0
    %613 = vperm.xlu0 %612, %v577
    %v614 = vpop.permute.xlu0 %613
    %617 = vset.pattern.permute.xlu0 0
    %618 = vperm.xlu0 %617, %v579
    %v619 = vpop.permute.xlu0 %618
    %622 = vset.pattern.permute.xlu0 0
    %623 = vperm.xlu0 %622, %v581
    %v624 = vpop.permute.xlu0 %623
    %627 = vset.pattern.permute.xlu0 0
    %628 = vperm.xlu0 %627, %v583
    %v629 = vpop.permute.xlu0 %628
    %632 = vset.pattern.permute.xlu0 0
    %633 = vperm.xlu0 %632, %v585
    %v634 = vpop.permute.xlu0 %633
    %637 = vset.pattern.permute.xlu0 0
    %638 = vperm.xlu0 %637, %v587
    %v639 = vpop.permute.xlu0 %638
    %642 = vset.pattern.permute.xlu0 0
    %643 = vperm.xlu0 %642, %v589
    %v644 = vpop.permute.xlu0 %643
    %v646 = vmul.f32 %v590, %v609
    %v647 = vmul.f32 %v591, %v609
    %v648 = vmul.f32 %v592, %v614
    %v649 = vmul.f32 %v593, %v614
    %v650 = vmul.f32 %v594, %v619
    %v651 = vmul.f32 %v595, %v619
    %v652 = vmul.f32 %v596, %v624
    %v653 = vmul.f32 %v597, %v624
    %v654 = vmul.f32 %v598, %v629
    %v655 = vmul.f32 %v599, %v629
    %v656 = vmul.f32 %v600, %v634
    %v657 = vmul.f32 %v601, %v634
    %v658 = vmul.f32 %v602, %v639
    %v659 = vmul.f32 %v603, %v639
    %v660 = vmul.f32 %v604, %v644
    %v661 = vmul.f32 %v605, %v644
    %662 = vst [vmem:[#allocation5] sm:$0xff] %v646
    %663 = vst [vmem:[#allocation5 + $0x8] sm:$0xff] %v647
    %664 = vst [vmem:[#allocation5 + $0x10] sm:$0xff] %v648
    %665 = vst [vmem:[#allocation5 + $0x18] sm:$0xff] %v649
    %666 = vst [vmem:[#allocation5 + $0x20] sm:$0xff] %v650
    %667 = vst [vmem:[#allocation5 + $0x28] sm:$0xff] %v651
    %668 = vst [vmem:[#allocation5 + $0x30] sm:$0xff] %v652
    %669 = vst [vmem:[#allocation5 + $0x38] sm:$0xff] %v653
    %670 = vst [vmem:[#allocation5 + $0x40] sm:$0xff] %v654
    %671 = vst [vmem:[#allocation5 + $0x48] sm:$0xff] %v655
    %672 = vst [vmem:[#allocation5 + $0x50] sm:$0xff] %v656
    %673 = vst [vmem:[#allocation5 + $0x58] sm:$0xff] %v657
    %674 = vst [vmem:[#allocation5 + $0x60] sm:$0xff] %v658
    %675 = vst [vmem:[#allocation5 + $0x68] sm:$0xff] %v659
    %676 = vst [vmem:[#allocation5 + $0x70] sm:$0xff] %v660
    %677 = vst [vmem:[#allocation5 + $0x78] sm:$0xff] %v661
    %s678 = scalar_lea.vmem [#allocation2], 128
    %v679 = vld [vmem:[%s678] sm:$0xff]
    %v680 = vld [vmem:[%s678 + $0x8] sm:$0xff]
    %v681 = vld [vmem:[%s678 + $0x10] sm:$0xff]
    %v682 = vld [vmem:[%s678 + $0x18] sm:$0xff]
    %v683 = vld [vmem:[%s678 + $0x20] sm:$0xff]
    %v684 = vld [vmem:[%s678 + $0x28] sm:$0xff]
    %v685 = vld [vmem:[%s678 + $0x30] sm:$0xff]
    %v686 = vld [vmem:[%s678 + $0x38] sm:$0xff]
    %v687 = vld [vmem:[%s678 + $0x40] sm:$0xff]
    %v688 = vld [vmem:[%s678 + $0x48] sm:$0xff]
    %v689 = vld [vmem:[%s678 + $0x50] sm:$0xff]
    %v690 = vld [vmem:[%s678 + $0x58] sm:$0xff]
    %v691 = vld [vmem:[%s678 + $0x60] sm:$0xff]
    %v692 = vld [vmem:[%s678 + $0x68] sm:$0xff]
    %v693 = vld [vmem:[%s678 + $0x70] sm:$0xff]
    %v694 = vld [vmem:[%s678 + $0x78] sm:$0xff]
    %695 = vset.pattern.permute.xlu0 1
    %696 = vperm.xlu0 %695, %v575
    %v697 = vpop.permute.xlu0 %696
    %699 = vset.pattern.permute.xlu0 1
    %700 = vperm.xlu0 %699, %v577
    %v701 = vpop.permute.xlu0 %700
    %703 = vset.pattern.permute.xlu0 1
    %704 = vperm.xlu0 %703, %v579
    %v705 = vpop.permute.xlu0 %704
    %707 = vset.pattern.permute.xlu0 1
    %708 = vperm.xlu0 %707, %v581
    %v709 = vpop.permute.xlu0 %708
    %711 = vset.pattern.permute.xlu0 1
    %712 = vperm.xlu0 %711, %v583
    %v713 = vpop.permute.xlu0 %712
    %715 = vset.pattern.permute.xlu0 1
    %716 = vperm.xlu0 %715, %v585
    %v717 = vpop.permute.xlu0 %716
    %719 = vset.pattern.permute.xlu0 1
    %720 = vperm.xlu0 %719, %v587
    %v721 = vpop.permute.xlu0 %720
    %723 = vset.pattern.permute.xlu0 1
    %724 = vperm.xlu0 %723, %v589
    %v725 = vpop.permute.xlu0 %724
    %v727 = vmul.f32 %v679, %v697
    %v728 = vmul.f32 %v680, %v697
    %v729 = vmul.f32 %v681, %v701
    %v730 = vmul.f32 %v682, %v701
    %v731 = vmul.f32 %v683, %v705
    %v732 = vmul.f32 %v684, %v705
    %v733 = vmul.f32 %v685, %v709
    %v734 = vmul.f32 %v686, %v709
    %v735 = vmul.f32 %v687, %v713
    %v736 = vmul.f32 %v688, %v713
    %v737 = vmul.f32 %v689, %v717
    %v738 = vmul.f32 %v690, %v717
    %v739 = vmul.f32 %v691, %v721
    %v740 = vmul.f32 %v692, %v721
    %v741 = vmul.f32 %v693, %v725
    %v742 = vmul.f32 %v694, %v725
    %s743 = scalar_lea.vmem [#allocation5], 128
    %744 = vst [vmem:[%s743] sm:$0xff] %v727
    %745 = vst [vmem:[%s743 + $0x8] sm:$0xff] %v728
    %746 = vst [vmem:[%s743 + $0x10] sm:$0xff] %v729
    %747 = vst [vmem:[%s743 + $0x18] sm:$0xff] %v730
    %748 = vst [vmem:[%s743 + $0x20] sm:$0xff] %v731
    %749 = vst [vmem:[%s743 + $0x28] sm:$0xff] %v732
    %750 = vst [vmem:[%s743 + $0x30] sm:$0xff] %v733
    %751 = vst [vmem:[%s743 + $0x38] sm:$0xff] %v734
    %752 = vst [vmem:[%s743 + $0x40] sm:$0xff] %v735
    %753 = vst [vmem:[%s743 + $0x48] sm:$0xff] %v736
    %754 = vst [vmem:[%s743 + $0x50] sm:$0xff] %v737
    %755 = vst [vmem:[%s743 + $0x58] sm:$0xff] %v738
    %756 = vst [vmem:[%s743 + $0x60] sm:$0xff] %v739
    %757 = vst [vmem:[%s743 + $0x68] sm:$0xff] %v740
    %758 = vst [vmem:[%s743 + $0x70] sm:$0xff] %v741
    %759 = vst [vmem:[%s743 + $0x78] sm:$0xff] %v742
    // Predicated region
    $region26: #{tpu_custom_call.1} parent=1 // pred_check
      _
    $region27: #{tpu_custom_call.1} parent=1 // pred_check_branch
      %761 = sbr.rel (0) target = $region29
    $region28: #{tpu_custom_call.1} parent=1 // pred_region
      %s763 = ssub.s32 4096, 4096
      %764 = vsyncadd [#allocation4], %s763
      %s765 = sshll.u32 [#allocation5], 4
      %s766 = int_to_ptr.vmem [resolvable:$true] %s765
      %771 = dma.vmem_to_hbm [thread:$0]  %s766, 4096, %s5, [#allocation4], 256, 256, 16
    $region29: #{tpu_custom_call.1} parent=1 // pred_fallthru
      _
    // Predicated region
    $region30: #{tpu_custom_call.1} parent=1 // pred_check
      _
    $region31: #{tpu_custom_call.1} parent=1 // pred_check_branch
      %773 = sbr.rel (0) target = $region33
    $region32: #{tpu_custom_call.1} parent=1 // pred_region
      %774 = dma.done [#allocation4], 4096
    $region33: #{tpu_custom_call.1} parent=1 // pred_fallthru
      _
    %775 = vsyncpa [#allocation3], 1
    %776 = vsyncpa [#allocation4], 1

</llo_original>
